<compile_context>
chip_gen: v5e
topology: v5e:2x2
jax: 0.10.0
libtpu: 0.0.40
codegen_flags: <defaults>
</compile_context>

<pallas_src>
import jax
import jax.numpy as jnp
from jax import lax
from jax.experimental import pallas as pl
from jax.experimental.pallas import tpu as pltpu


def _vmem_capacity_bytes() -> int:
    """Physical VMEM of the local TPU; conservative (v7x) fallback if unknown."""
    try:
        return int(pltpu.get_tpu_info().vmem_capacity_bytes)
    except Exception:
        return 64 * 1024 * 1024


def _pick_tiles(n: int, c: int, hw: int, itemsize: int, vmem_cap: int):
    """Choose (batch block NB, channel block CT).

    Policy:
      * per-buffer x-block budget ~ vmem_cap/8 (>= 1 MiB), so the double-buffered
        input block dominates VMEM but per-grid-step overhead is well hidden.
      * prefer CT = C (collapses the reduction axis); otherwise the largest
        multiple-of-8 divisor of C that fits the budget.
      * NB modest (8..32); for N >= 16 prefer NB < N so the leading "parallel"
        axis has >= 2 blocks (megacore sharding on 2-TC chips).
      * If even CT = 8 does not fit at a given NB, degrade NB instead of silently
        blowing the budget; only as a true last resort exceed the budget.
    """
    per_buf_budget = max(1 << 20, vmem_cap // 8)

    # Legal batch blocks: full batch, or a multiple of 8 that divides N
    # (output block is (NB, HW): second-to-last dim must be 8-aligned or full).
    nb_candidates = [nb for nb in (32, 16, 8) if n % nb == 0 and nb < n]
    if n >= 16 and nb_candidates:
        nb_order = nb_candidates + [n]      # prefer >= 2 batch blocks
    else:
        nb_order = [n] + nb_candidates

    # First preference: full-C channel block (no cross-step accumulation at all).
    for nb in nb_order:
        if nb * c * hw * itemsize <= per_buf_budget:
            return nb, c

    def ct_for(nb):
        if c < 8:
            return None                     # cannot tile C below 8 (BlockSpec rule)
        max_ct = per_buf_budget // (nb * hw * itemsize)
        ct = min(c, (max_ct // 8) * 8)
        while ct >= 8:
            if c % ct == 0:
                return ct
            ct -= 8
        return None

    # Second preference: tiled C that fits the budget, degrading NB if needed.
    for nb in nb_order:
        ct = ct_for(nb)
        if ct is not None:
            return nb, ct

    # Last resort (awkward C with a huge H*W): exceed the budget rather than fail;
    # vmem_limit_bytes below is raised to cover the actual plan.
    return nb_order[-1] if n >= 16 else nb_order[0], c


@jax.jit
def spatial_attention1(x, conv_w):
    """x: [N, C, H, W]; conv_w: [1, 2, 3, 3] (Conv2d(2, 1, 3, padding=1, bias=False))."""
    n, c, h, w = x.shape
    hw = h * w
    itemsize = x.dtype.itemsize

    # Lane-dense view of x: spatial flattened into the last (lane) dim. Free
    # (contiguous) reshape in the wrapper — no extra HBM copy.
    x_flat = x.reshape(n, c, hw)

    # Precompute the 18 conv coefficient maps, shape (18, HW):
    #   row (ch*9 + (dh+1)*3 + (dw+1)) = W[0,ch,dh+1,dw+1] * (1/C if ch==0) * border_mask
    # The border mask is exactly the conv's zero padding (invalid taps -> 0), and
    # folding 1/C removes the mean's divide from the hot reduction path.
    ii = jnp.repeat(jnp.arange(h), w)          # row index of each flattened position
    jj = jnp.tile(jnp.arange(w), h)            # col index of each flattened position
    wf = conv_w.astype(jnp.float32)
    coeff_rows = []
    shifts = []
    for ch in range(2):                        # 0: avg channel, 1: max channel
        scale = (1.0 / c) if ch == 0 else 1.0
        for dh in (-1, 0, 1):
            for dw in (-1, 0, 1):
                valid = ((ii + dh >= 0) & (ii + dh < h) &
                         (jj + dw >= 0) & (jj + dw < w)).astype(jnp.float32)
                coeff_rows.append(valid * (wf[0, ch, dh + 1, dw + 1] * scale))
                shifts.append((-(dh * w + dw)) % hw)   # static roll amounts
    coeff = jnp.stack(coeff_rows, axis=0)      # (18, HW) f32
    shifts = tuple(shifts)                     # shifts[k] == shifts[k + 9]

    # Generation-aware tiling + VMEM plan.
    vmem_cap = _vmem_capacity_bytes()
    nb, ct = _pick_tiles(n, c, hw, itemsize, vmem_cap)
    grid = (n // nb, c // ct)                  # (batch blocks, channel blocks)

    x_block_bytes = nb * ct * hw * itemsize
    out_block_bytes = nb * hw * itemsize
    coeff_bytes = 18 * hw * 4
    scratch_bytes = nb * hw * 4 + nb * hw * itemsize
    planned = 2 * x_block_bytes + 2 * out_block_bytes + 2 * coeff_bytes + scratch_bytes
    vmem_limit = vmem_cap * 5 // 8             # ~40 MiB on v7x (64), ~80 MiB on v5e/v6e (128)
    vmem_limit = int(min(max(vmem_limit, planned + (8 << 20)), vmem_cap))

    def kernel(coeff_ref, x_ref, o_ref, sum_ref, max_ref):
        cb = pl.program_id(1)

        xb = x_ref[...]                                       # (NB, CT, HW), native dtype
        part_sum = jnp.sum(xb, axis=1, dtype=jnp.float32)     # f32 accumulation
        part_max = jnp.max(xb, axis=1)                        # exact in native dtype

        @pl.when(cb == 0)
        def _init():
            sum_ref[...] = part_sum
            max_ref[...] = part_max

        @pl.when(cb > 0)
        def _accumulate():
            sum_ref[...] = sum_ref[...] + part_sum
            max_ref[...] = jnp.maximum(max_ref[...], part_max)

        @pl.when(cb == pl.num_programs(1) - 1)
        def _finalize():
            cf = coeff_ref[...]                               # (18, HW) f32
            acc = jnp.zeros((nb, hw), jnp.float32)
            # Pass 1: 9 avg-channel taps; only the channel sum is live
            # (1/C already folded into cf rows 0..8). 3x3 conv = roll (XLU) +
            # masked FMA (VPU); coeff rows zero the wrapped / out-of-border taps.
            s = sum_ref[...]
            for k in range(9):
                rolled = s if shifts[k] == 0 else pltpu.roll(s, shift=shifts[k], axis=1)
                acc = acc + cf[k:k + 1, :] * rolled
            # Pass 2: 9 max-channel taps; the sum is dead, only the max is live.
            m = max_ref[...].astype(jnp.float32)
            for k in range(9):
                sk = shifts[k + 9]
                rolled = m if sk == 0 else pltpu.roll(m, shift=sk, axis=1)
                acc = acc + cf[k + 9:k + 10, :] * rolled
            o_ref[...] = jax.nn.sigmoid(acc).astype(o_ref.dtype)

    out_flat = pl.pallas_call(
        kernel,
        out_shape=jax.ShapeDtypeStruct((n, hw), x.dtype),
        grid=grid,
        in_specs=[
            pl.BlockSpec((18, hw), lambda bi, ci: (0, 0)),           # conv coefficients
            pl.BlockSpec((nb, ct, hw), lambda bi, ci: (bi, ci, 0)),  # lane-dense x tile
        ],
        out_specs=pl.BlockSpec((nb, hw), lambda bi, ci: (bi, 0)),    # lane-dense output
        scratch_shapes=[
            pltpu.VMEM((nb, hw), jnp.float32),   # running channel sum (f32)
            pltpu.VMEM((nb, hw), x.dtype),       # running channel max (native dtype)
        ],
        compiler_params=pltpu.CompilerParams(
            dimension_semantics=("parallel", "arbitrary"),  # batch parallel, C reduction
            vmem_limit_bytes=vmem_limit,                    # generation-aware
        ),
    )(coeff, x_flat)

    return out_flat.reshape(n, 1, h, w)


def _reference(x, conv_w):
    """Pure-JAX reference matching the PyTorch forward."""
    avg = jnp.mean(x, axis=1, keepdims=True)
    mx = jnp.max(x, axis=1, keepdims=True)
    cat = jnp.concatenate([avg, mx], axis=1)                       # (N, 2, H, W)
    out = lax.conv_general_dilated(
        cat, conv_w, window_strides=(1, 1), padding=((1, 1), (1, 1)),
        dimension_numbers=("NCHW", "OIHW", "NCHW"))
    return jax.nn.sigmoid(out)


if __name__ == "__main__":
    key = jax.random.PRNGKey(0)
    kx, kw = jax.random.split(key)

    # deterministic synthetic input + parameters (Conv2d(2, 1, 3) weight shape)
    x = jax.random.normal(kx, (2, 4, 16, 16), dtype=jnp.float32)
    conv_w = jax.random.normal(kw, (1, 2, 3, 3), dtype=jnp.float32) * 0.2

    out = jax.block_until_ready(spatial_attention1(x, conv_w))
    ref = jax.block_until_ready(_reference(x, conv_w))

    assert out.shape == (2, 1, 16, 16), out.shape
    max_err = float(jnp.max(jnp.abs(out - ref)))
    assert jnp.allclose(out, ref, atol=1e-5, rtol=1e-5), max_err

    print("KERNEL_OK")
</pallas_src>

<mosaic_0001>
module attributes {stable_mosaic.version = 11 : i64} {
  func.func @kernel(%arg0: i32, %arg1: i32, %arg2: memref<18x256xf32, #tpu.memory_space<vmem>>, %arg3: memref<2x4x256xf32, #tpu.memory_space<vmem>>, %arg4: memref<2x256xf32, #tpu.memory_space<vmem>>, %arg5: memref<2x256xf32, #tpu.memory_space<vmem>>, %arg6: memref<2x256xf32, #tpu.memory_space<vmem>>) attributes {dimension_semantics = [#tpu.dimension_semantics<parallel>, #tpu.dimension_semantics<arbitrary>], iteration_bounds = array<i64: 1, 1>, scalar_prefetch = 0 : i64, scratch_operands = 2 : i64, tpu.core_type = #tpu.core_type<tc>, window_params = [{pipeline_mode = #tpu.pipeline_mode<synchronous>, transform_indices = @transform_0, window_bounds = array<i64: 18, 256>}, {transform_indices = @transform_1, window_bounds = array<i64: 2, 4, 256>}, {transform_indices = @transform_2, window_bounds = array<i64: 2, 256>}]} {
    %c0 = arith.constant 0 : index
    %c0_0 = arith.constant 0 : index
    %c0_1 = arith.constant 0 : index
    %0 = vector.load %arg3[%c0, %c0_0, %c0_1] : memref<2x4x256xf32, #tpu.memory_space<vmem>>, vector<2x4x256xf32>
    %cst = arith.constant dense<0.000000e+00> : vector<2x256xf32>
    %1 = vector.multi_reduction <add>, %0, %cst [1] : vector<2x4x256xf32> to vector<2x256xf32>
    %cst_2 = arith.constant dense<0xFF800000> : vector<2x256xf32>
    %2 = vector.multi_reduction <maximumf>, %0, %cst_2 [1] : vector<2x4x256xf32> to vector<2x256xf32>
    %c0_i32 = arith.constant 0 : i32
    %3 = arith.cmpi eq, %arg1, %c0_i32 : i32
    %4 = arith.extui %3 : i1 to i32
    %c0_i32_3 = arith.constant 0 : i32
    %5 = arith.cmpi ne, %4, %c0_i32_3 : i32
    scf.if %5 {
      %c0_8 = arith.constant 0 : index
      %c0_9 = arith.constant 0 : index
      %12 = vector.load %arg5[%c0_8, %c0_9] : memref<2x256xf32, #tpu.memory_space<vmem>>, vector<2x256xf32>
      tpu.vector_store %arg5[%c0_8, %c0_9], %1 {strides = array<i32>} : memref<2x256xf32, #tpu.memory_space<vmem>>, vector<2x256xf32>,
      %c0_10 = arith.constant 0 : index
      %c0_11 = arith.constant 0 : index
      %13 = vector.load %arg6[%c0_10, %c0_11] : memref<2x256xf32, #tpu.memory_space<vmem>>, vector<2x256xf32>
      tpu.vector_store %arg6[%c0_10, %c0_11], %2 {strides = array<i32>} : memref<2x256xf32, #tpu.memory_space<vmem>>, vector<2x256xf32>,
    } else {
    }
    %c0_i32_4 = arith.constant 0 : i32
    %6 = arith.cmpi sgt, %arg1, %c0_i32_4 : i32
    %7 = arith.extui %6 : i1 to i32
    %c0_i32_5 = arith.constant 0 : i32
    %8 = arith.cmpi ne, %7, %c0_i32_5 : i32
    scf.if %8 {
      %c0_8 = arith.constant 0 : index
      %c0_9 = arith.constant 0 : index
      %12 = vector.load %arg5[%c0_8, %c0_9] : memref<2x256xf32, #tpu.memory_space<vmem>>, vector<2x256xf32>
      %13 = arith.addf %12, %1 : vector<2x256xf32>
      %c0_10 = arith.constant 0 : index
      %c0_11 = arith.constant 0 : index
      %14 = vector.load %arg5[%c0_10, %c0_11] : memref<2x256xf32, #tpu.memory_space<vmem>>, vector<2x256xf32>
      tpu.vector_store %arg5[%c0_10, %c0_11], %13 {strides = array<i32>} : memref<2x256xf32, #tpu.memory_space<vmem>>, vector<2x256xf32>,
      %c0_12 = arith.constant 0 : index
      %c0_13 = arith.constant 0 : index
      %15 = vector.load %arg6[%c0_12, %c0_13] : memref<2x256xf32, #tpu.memory_space<vmem>>, vector<2x256xf32>
      %16 = arith.maximumf %15, %2 : vector<2x256xf32>
      %c0_14 = arith.constant 0 : index
      %c0_15 = arith.constant 0 : index
      %17 = vector.load %arg6[%c0_14, %c0_15] : memref<2x256xf32, #tpu.memory_space<vmem>>, vector<2x256xf32>
      tpu.vector_store %arg6[%c0_14, %c0_15], %16 {strides = array<i32>} : memref<2x256xf32, #tpu.memory_space<vmem>>, vector<2x256xf32>,
    } else {
    }
    %c0_i32_6 = arith.constant 0 : i32
    %9 = arith.cmpi eq, %arg1, %c0_i32_6 : i32
    %10 = arith.extui %9 : i1 to i32
    %c0_i32_7 = arith.constant 0 : i32
    %11 = arith.cmpi ne, %10, %c0_i32_7 : i32
    scf.if %11 {
      %c0_8 = arith.constant 0 : index
      %c0_9 = arith.constant 0 : index
      %12 = vector.load %arg2[%c0_8, %c0_9] : memref<18x256xf32, #tpu.memory_space<vmem>>, vector<18x256xf32>
      %cst_10 = arith.constant 0.000000e+00 : f32
      %13 = vector.broadcast %cst_10 : f32 to vector<2x256xf32>
      %c0_11 = arith.constant 0 : index
      %c0_12 = arith.constant 0 : index
      %14 = vector.load %arg5[%c0_11, %c0_12] : memref<2x256xf32, #tpu.memory_space<vmem>>, vector<2x256xf32>
      %c17_i32 = arith.constant 17 : i32
      %15 = tpu.dynamic_rotate %14 by %c17_i32 dim 1 : vector<2x256xf32>, i32 -> vector<2x256xf32>
      %16 = vector.extract_strided_slice %12 {offsets = [0, 0], sizes = [1, 256], strides = [1, 1]} : vector<18x256xf32> to vector<1x256xf32>
      %17 = vector.broadcast %16 : vector<1x256xf32> to vector<2x256xf32>
      %18 = arith.mulf %17, %15 : vector<2x256xf32>
      %19 = arith.addf %13, %18 : vector<2x256xf32>
      %c16_i32 = arith.constant 16 : i32
      %20 = tpu.dynamic_rotate %14 by %c16_i32 dim 1 : vector<2x256xf32>, i32 -> vector<2x256xf32>
      %21 = vector.extract_strided_slice %12 {offsets = [1, 0], sizes = [1, 256], strides = [1, 1]} : vector<18x256xf32> to vector<1x256xf32>
      %22 = vector.broadcast %21 : vector<1x256xf32> to vector<2x256xf32>
      %23 = arith.mulf %22, %20 : vector<2x256xf32>
      %24 = arith.addf %19, %23 : vector<2x256xf32>
      %c15_i32 = arith.constant 15 : i32
      %25 = tpu.dynamic_rotate %14 by %c15_i32 dim 1 : vector<2x256xf32>, i32 -> vector<2x256xf32>
      %26 = vector.extract_strided_slice %12 {offsets = [2, 0], sizes = [1, 256], strides = [1, 1]} : vector<18x256xf32> to vector<1x256xf32>
      %27 = vector.broadcast %26 : vector<1x256xf32> to vector<2x256xf32>
      %28 = arith.mulf %27, %25 : vector<2x256xf32>
      %29 = arith.addf %24, %28 : vector<2x256xf32>
      %c1_i32 = arith.constant 1 : i32
      %30 = tpu.dynamic_rotate %14 by %c1_i32 dim 1 : vector<2x256xf32>, i32 -> vector<2x256xf32>
      %31 = vector.extract_strided_slice %12 {offsets = [3, 0], sizes = [1, 256], strides = [1, 1]} : vector<18x256xf32> to vector<1x256xf32>
      %32 = vector.broadcast %31 : vector<1x256xf32> to vector<2x256xf32>
      %33 = arith.mulf %32, %30 : vector<2x256xf32>
      %34 = arith.addf %29, %33 : vector<2x256xf32>
      %35 = vector.extract_strided_slice %12 {offsets = [4, 0], sizes = [1, 256], strides = [1, 1]} : vector<18x256xf32> to vector<1x256xf32>
      %36 = vector.broadcast %35 : vector<1x256xf32> to vector<2x256xf32>
      %37 = arith.mulf %36, %14 : vector<2x256xf32>
      %38 = arith.addf %34, %37 : vector<2x256xf32>
      %c255_i32 = arith.constant 255 : i32
      %39 = tpu.dynamic_rotate %14 by %c255_i32 dim 1 : vector<2x256xf32>, i32 -> vector<2x256xf32>
      %40 = vector.extract_strided_slice %12 {offsets = [5, 0], sizes = [1, 256], strides = [1, 1]} : vector<18x256xf32> to vector<1x256xf32>
      %41 = vector.broadcast %40 : vector<1x256xf32> to vector<2x256xf32>
      %42 = arith.mulf %41, %39 : vector<2x256xf32>
      %43 = arith.addf %38, %42 : vector<2x256xf32>
      %c241_i32 = arith.constant 241 : i32
      %44 = tpu.dynamic_rotate %14 by %c241_i32 dim 1 : vector<2x256xf32>, i32 -> vector<2x256xf32>
      %45 = vector.extract_strided_slice %12 {offsets = [6, 0], sizes = [1, 256], strides = [1, 1]} : vector<18x256xf32> to vector<1x256xf32>
      %46 = vector.broadcast %45 : vector<1x256xf32> to vector<2x256xf32>
      %47 = arith.mulf %46, %44 : vector<2x256xf32>
      %48 = arith.addf %43, %47 : vector<2x256xf32>
      %c240_i32 = arith.constant 240 : i32
      %49 = tpu.dynamic_rotate %14 by %c240_i32 dim 1 : vector<2x256xf32>, i32 -> vector<2x256xf32>
      %50 = vector.extract_strided_slice %12 {offsets = [7, 0], sizes = [1, 256], strides = [1, 1]} : vector<18x256xf32> to vector<1x256xf32>
      %51 = vector.broadcast %50 : vector<1x256xf32> to vector<2x256xf32>
      %52 = arith.mulf %51, %49 : vector<2x256xf32>
      %53 = arith.addf %48, %52 : vector<2x256xf32>
      %c239_i32 = arith.constant 239 : i32
      %54 = tpu.dynamic_rotate %14 by %c239_i32 dim 1 : vector<2x256xf32>, i32 -> vector<2x256xf32>
      %55 = vector.extract_strided_slice %12 {offsets = [8, 0], sizes = [1, 256], strides = [1, 1]} : vector<18x256xf32> to vector<1x256xf32>
      %56 = vector.broadcast %55 : vector<1x256xf32> to vector<2x256xf32>
      %57 = arith.mulf %56, %54 : vector<2x256xf32>
      %58 = arith.addf %53, %57 : vector<2x256xf32>
      %c0_13 = arith.constant 0 : index
      %c0_14 = arith.constant 0 : index
      %59 = vector.load %arg6[%c0_13, %c0_14] : memref<2x256xf32, #tpu.memory_space<vmem>>, vector<2x256xf32>
      %c17_i32_15 = arith.constant 17 : i32
      %60 = tpu.dynamic_rotate %59 by %c17_i32_15 dim 1 : vector<2x256xf32>, i32 -> vector<2x256xf32>
      %61 = vector.extract_strided_slice %12 {offsets = [9, 0], sizes = [1, 256], strides = [1, 1]} : vector<18x256xf32> to vector<1x256xf32>
      %62 = vector.broadcast %61 : vector<1x256xf32> to vector<2x256xf32>
      %63 = arith.mulf %62, %60 : vector<2x256xf32>
      %64 = arith.addf %58, %63 : vector<2x256xf32>
      %c16_i32_16 = arith.constant 16 : i32
      %65 = tpu.dynamic_rotate %59 by %c16_i32_16 dim 1 : vector<2x256xf32>, i32 -> vector<2x256xf32>
      %66 = vector.extract_strided_slice %12 {offsets = [10, 0], sizes = [1, 256], strides = [1, 1]} : vector<18x256xf32> to vector<1x256xf32>
      %67 = vector.broadcast %66 : vector<1x256xf32> to vector<2x256xf32>
      %68 = arith.mulf %67, %65 : vector<2x256xf32>
      %69 = arith.addf %64, %68 : vector<2x256xf32>
      %c15_i32_17 = arith.constant 15 : i32
      %70 = tpu.dynamic_rotate %59 by %c15_i32_17 dim 1 : vector<2x256xf32>, i32 -> vector<2x256xf32>
      %71 = vector.extract_strided_slice %12 {offsets = [11, 0], sizes = [1, 256], strides = [1, 1]} : vector<18x256xf32> to vector<1x256xf32>
      %72 = vector.broadcast %71 : vector<1x256xf32> to vector<2x256xf32>
      %73 = arith.mulf %72, %70 : vector<2x256xf32>
      %74 = arith.addf %69, %73 : vector<2x256xf32>
      %c1_i32_18 = arith.constant 1 : i32
      %75 = tpu.dynamic_rotate %59 by %c1_i32_18 dim 1 : vector<2x256xf32>, i32 -> vector<2x256xf32>
      %76 = vector.extract_strided_slice %12 {offsets = [12, 0], sizes = [1, 256], strides = [1, 1]} : vector<18x256xf32> to vector<1x256xf32>
      %77 = vector.broadcast %76 : vector<1x256xf32> to vector<2x256xf32>
      %78 = arith.mulf %77, %75 : vector<2x256xf32>
      %79 = arith.addf %74, %78 : vector<2x256xf32>
      %80 = vector.extract_strided_slice %12 {offsets = [13, 0], sizes = [1, 256], strides = [1, 1]} : vector<18x256xf32> to vector<1x256xf32>
      %81 = vector.broadcast %80 : vector<1x256xf32> to vector<2x256xf32>
      %82 = arith.mulf %81, %59 : vector<2x256xf32>
      %83 = arith.addf %79, %82 : vector<2x256xf32>
      %c255_i32_19 = arith.constant 255 : i32
      %84 = tpu.dynamic_rotate %59 by %c255_i32_19 dim 1 : vector<2x256xf32>, i32 -> vector<2x256xf32>
      %85 = vector.extract_strided_slice %12 {offsets = [14, 0], sizes = [1, 256], strides = [1, 1]} : vector<18x256xf32> to vector<1x256xf32>
      %86 = vector.broadcast %85 : vector<1x256xf32> to vector<2x256xf32>
      %87 = arith.mulf %86, %84 : vector<2x256xf32>
      %88 = arith.addf %83, %87 : vector<2x256xf32>
      %c241_i32_20 = arith.constant 241 : i32
      %89 = tpu.dynamic_rotate %59 by %c241_i32_20 dim 1 : vector<2x256xf32>, i32 -> vector<2x256xf32>
      %90 = vector.extract_strided_slice %12 {offsets = [15, 0], sizes = [1, 256], strides = [1, 1]} : vector<18x256xf32> to vector<1x256xf32>
      %91 = vector.broadcast %90 : vector<1x256xf32> to vector<2x256xf32>
      %92 = arith.mulf %91, %89 : vector<2x256xf32>
      %93 = arith.addf %88, %92 : vector<2x256xf32>
      %c240_i32_21 = arith.constant 240 : i32
      %94 = tpu.dynamic_rotate %59 by %c240_i32_21 dim 1 : vector<2x256xf32>, i32 -> vector<2x256xf32>
      %95 = vector.extract_strided_slice %12 {offsets = [16, 0], sizes = [1, 256], strides = [1, 1]} : vector<18x256xf32> to vector<1x256xf32>
      %96 = vector.broadcast %95 : vector<1x256xf32> to vector<2x256xf32>
      %97 = arith.mulf %96, %94 : vector<2x256xf32>
      %98 = arith.addf %93, %97 : vector<2x256xf32>
      %c239_i32_22 = arith.constant 239 : i32
      %99 = tpu.dynamic_rotate %59 by %c239_i32_22 dim 1 : vector<2x256xf32>, i32 -> vector<2x256xf32>
      %100 = vector.extract_strided_slice %12 {offsets = [17, 0], sizes = [1, 256], strides = [1, 1]} : vector<18x256xf32> to vector<1x256xf32>
      %101 = vector.broadcast %100 : vector<1x256xf32> to vector<2x256xf32>
      %102 = arith.mulf %101, %99 : vector<2x256xf32>
      %103 = arith.addf %98, %102 : vector<2x256xf32>
      %104 = arith.negf %103 : vector<2x256xf32>
      %105 = math.exp %104 : vector<2x256xf32>
      %cst_23 = arith.constant 1.000000e+00 : f32
      %106 = vector.broadcast %cst_23 : f32 to vector<2x256xf32>
      %107 = arith.addf %106, %105 : vector<2x256xf32>
      %108 = arith.divf %106, %107 : vector<2x256xf32>
      %c0_24 = arith.constant 0 : index
      %c0_25 = arith.constant 0 : index
      %109 = vector.load %arg4[%c0_24, %c0_25] : memref<2x256xf32, #tpu.memory_space<vmem>>, vector<2x256xf32>
      tpu.vector_store %arg4[%c0_24, %c0_25], %108 {strides = array<i32>} : memref<2x256xf32, #tpu.memory_space<vmem>>, vector<2x256xf32>,
    } else {
    }
    return
  }
  func.func @transform_0(%arg0: i32, %arg1: i32) -> (i32, i32) {
    %c0_i32 = arith.constant 0 : i32
    %c0_i32_0 = arith.constant 0 : i32
    %c0_i32_1 = arith.constant 0 : i32
    return %c0_i32, %c0_i32_0 : i32, i32
  }
  func.func @transform_1(%arg0: i32, %arg1: i32) -> (i32, i32, i32) {
    %c0_i32 = arith.constant 0 : i32
    %c0_i32_0 = arith.constant 0 : i32
    return %arg0, %arg1, %c0_i32 : i32, i32, i32
  }
  func.func @transform_2(%arg0: i32, %arg1: i32) -> (i32, i32) {
    %c0_i32 = arith.constant 0 : i32
    %c0_i32_0 = arith.constant 0 : i32
    return %arg0, %c0_i32 : i32, i32
  }
}

</mosaic_0001>

<llo_original>
// kernel: spatial_attention1.1
$region0: #{spatial_attention1.1}
  #allocation0 [shape = 'u32[]', space=smem, size = 0x4, offset = 0x4, fixed_abs, tag = 'smem constant byte address 0x4 - core index']
  #allocation1 [shape = 'u32[72,128]{1,0:T(1,128)}', space=vmem, size = 0x9000, scoped, tag = 'internal scratch']
  #allocation2 [shape = 'f32[2,256]{1,0:T(2,128)}', space=vmem, size = 0x800, scoped, tag = 'scratch operand']
  #allocation3 [shape = 'f32[2,256]{1,0:T(2,128)}', space=vmem, size = 0x800, scoped, tag = 'scratch operand']
  %s0 = inlined_call_operand.vmem [shape: f32[18,256], index: 0, kind: input, shape index: {}]
  %s1 = inlined_call_operand.vmem [shape: f32[2,4,256], index: 1, kind: input, shape index: {}]
  %s2 = inlined_call_operand.vmem [shape: f32[2,256], index: 2, kind: output, shape index: {}]
  %s3 = sld [smem:[#allocation0]]
  $region30: #{spatial_attention1.1} parent=0
    _
  %s5 = ssub.s32 1, %s3
  %s6 = scalar_select 0, %s5, %s3
  // Predicated region
  $region2: #{spatial_attention1.1} parent=0 // pred_check
    _
  $region3: #{spatial_attention1.1} parent=0 // pred_check_branch
    %8 = sbr.rel (0) target = $region5
  $region4: #{spatial_attention1.1} parent=0 // pred_region
    _
  $region5: #{spatial_attention1.1} parent=0 // pred_fallthru
    _
  // Predicated region
  $region6: #{spatial_attention1.1} parent=0 // pred_check
    _
  $region7: #{spatial_attention1.1} parent=0 // pred_check_branch
    %10 = sbr.rel (0) target = $region9
  $region8: #{spatial_attention1.1} parent=0 // pred_region
    _
  $region9: #{spatial_attention1.1} parent=0 // pred_fallthru
    _
  %v11 = vld [vmem:[%s1] sm:$0xff]
  %v12 = vld [vmem:[%s1 + $0x8] sm:$0xff]
  %15 = vst [vmem:[#allocation1] ss:$2 sm:$0xff] %v11
  %v16 = vld.sshfl [vmem:[#allocation1] sm:$0xff pattern:$0x75316420]
  %v17 = vld.sshfl [vmem:[#allocation1 + $0x8] sm:$0xff pattern:$0x75316420]
  %s18 = scalar_lea.vmem [#allocation1], 16
  %19 = vst [vmem:[%s18] ss:$2 sm:$0xff] %v12
  %v20 = vld.sshfl [vmem:[#allocation1 + $0x10] sm:$0xff pattern:$0x75316420]
  %v21 = vld.sshfl [vmem:[#allocation1 + $0x18] sm:$0xff pattern:$0x75316420]
  %vm26 = vcmask 1043456
  %v27 = vsel %vm26, %v16, 0.0
  %v28 = vrot.slane %v27, 4
  %v29 = vadd.f32 %v27, %v28
  %v30 = vrot.slane %v29, 2
  %v31 = vadd.f32 %v29, %v30
  %v32 = vrot.slane %v31, 1
  %v33 = vadd.f32 %v31, %v32
  %v34 = vsel %vm26, %v17, 0.0
  %v35 = vrot.slane %v34, 4
  %v36 = vadd.f32 %v34, %v35
  %v37 = vrot.slane %v36, 2
  %v38 = vadd.f32 %v36, %v37
  %v39 = vrot.slane %v38, 1
  %v40 = vadd.f32 %v38, %v39
  %v41 = vsel %vm26, %v20, 0.0
  %v42 = vrot.slane %v41, 4
  %v43 = vadd.f32 %v41, %v42
  %v44 = vrot.slane %v43, 2
  %v45 = vadd.f32 %v43, %v44
  %v46 = vrot.slane %v45, 1
  %v47 = vadd.f32 %v45, %v46
  %v48 = vsel %vm26, %v21, 0.0
  %v49 = vrot.slane %v48, 4
  %v50 = vadd.f32 %v48, %v49
  %v51 = vrot.slane %v50, 2
  %v52 = vadd.f32 %v50, %v51
  %v53 = vrot.slane %v52, 1
  %v54 = vadd.f32 %v52, %v53
  %55 = vst [vmem:[#allocation1] ss:$2 sm:$0xff] %v11
  %v56 = vld.sshfl [vmem:[#allocation1] sm:$0xff pattern:$0x75316420]
  %v57 = vld.sshfl [vmem:[#allocation1 + $0x8] sm:$0xff pattern:$0x75316420]
  %s58 = scalar_lea.vmem [#allocation1], 16
  %59 = vst [vmem:[%s58] ss:$2 sm:$0xff] %v12
  %v60 = vld.sshfl [vmem:[#allocation1 + $0x10] sm:$0xff pattern:$0x75316420]
  %v61 = vld.sshfl [vmem:[#allocation1 + $0x18] sm:$0xff pattern:$0x75316420]
  %v66 = vsel %vm26, %v56, -inf
  %v67 = vrot.slane %v66, 4
  %v68 = vmax.f32 %v66, %v67
  %v69 = vrot.slane %v68, 2
  %v70 = vmax.f32 %v68, %v69
  %v71 = vrot.slane %v70, 1
  %v72 = vmax.f32 %v70, %v71
  %v73 = vsel %vm26, %v57, -inf
  %v74 = vrot.slane %v73, 4
  %v75 = vmax.f32 %v73, %v74
  %v76 = vrot.slane %v75, 2
  %v77 = vmax.f32 %v75, %v76
  %v78 = vrot.slane %v77, 1
  %v79 = vmax.f32 %v77, %v78
  %v80 = vsel %vm26, %v60, -inf
  %v81 = vrot.slane %v80, 4
  %v82 = vmax.f32 %v80, %v81
  %v83 = vrot.slane %v82, 2
  %v84 = vmax.f32 %v82, %v83
  %v85 = vrot.slane %v84, 1
  %v86 = vmax.f32 %v84, %v85
  %v87 = vsel %vm26, %v61, -inf
  %v88 = vrot.slane %v87, 4
  %v89 = vmax.f32 %v87, %v88
  %v90 = vrot.slane %v89, 2
  %v91 = vmax.f32 %v89, %v90
  %v92 = vrot.slane %v91, 1
  %v93 = vmax.f32 %v91, %v92
  %p94 = scmp.eq.s32.totalorder 0, 0
  // Predicated region
  $region10: #{spatial_attention1.1} parent=0 // pred_check
    %p95 = pneg %p94
  $region11: #{spatial_attention1.1} parent=0 // pred_check_branch
    %97 = sbr.rel (%p95) target = $region13
  $region12: #{spatial_attention1.1} parent=0 // pred_region
    %v102 = vrot.slane %v40, 6
    %v103 = vrot.slane %v54, 6
    %vm104 = vcmask 1041408
    %v105 = vsel %vm104, %v33, %v102
    %v106 = vsel %vm104, %v47, %v103
    %vm107 = vcmask 1044484
    %v108 = vsel %vm107, %v105, %v105
    %vm109 = vcmask 1046534
    %v110 = vsel %vm109, %v105, %v108
    %v111 = vrot.slane %v106, 7
    %vm112 = vcmask 1041409
    %v113 = vsel %vm112, %v111, %v110
    %vm114 = vcmask 1043459
    %v115 = vsel %vm114, %v111, %v113
    %vm116 = vcmask 1045509
    %v117 = vsel %vm116, %v111, %v115
    %vm118 = vcmask 1047559
    %v119 = vsel %vm118, %v111, %v117
    %121 = vst [vmem:[#allocation2] sm:$0xf] %v119
    %v126 = vrot.slane %v79, 6
    %v127 = vrot.slane %v93, 6
    %v128 = vsel %vm104, %v72, %v126
    %v129 = vsel %vm104, %v86, %v127
    %v130 = vsel %vm107, %v128, %v128
    %v131 = vsel %vm109, %v128, %v130
    %v132 = vrot.slane %v129, 7
    %v133 = vsel %vm112, %v132, %v131
    %v134 = vsel %vm114, %v132, %v133
    %v135 = vsel %vm116, %v132, %v134
    %v136 = vsel %vm118, %v132, %v135
    %138 = vst [vmem:[#allocation3] sm:$0xf] %v136
  $region13: #{spatial_attention1.1} parent=0 // pred_fallthru
    _
  %p139 = scmp.gt.s32.totalorder 0, 0
  // Predicated region
  $region14: #{spatial_attention1.1} parent=0 // pred_check
    %p140 = pneg %p139
  $region15: #{spatial_attention1.1} parent=0 // pred_check_branch
    %142 = sbr.rel (%p140) target = $region17
  $region16: #{spatial_attention1.1} parent=0 // pred_region
    %v143 = vld [vmem:[#allocation2] sm:$0xf]
    %v148 = vrot.slane %v40, 6
    %v149 = vrot.slane %v54, 6
    %vm150 = vcmask 1041408
    %v151 = vsel %vm150, %v33, %v148
    %v152 = vsel %vm150, %v47, %v149
    %vm153 = vcmask 1044484
    %v154 = vsel %vm153, %v151, %v151
    %vm155 = vcmask 1046534
    %v156 = vsel %vm155, %v151, %v154
    %v157 = vrot.slane %v152, 7
    %vm158 = vcmask 1041409
    %v159 = vsel %vm158, %v157, %v156
    %vm160 = vcmask 1043459
    %v161 = vsel %vm160, %v157, %v159
    %vm162 = vcmask 1045509
    %v163 = vsel %vm162, %v157, %v161
    %vm164 = vcmask 1047559
    %v165 = vsel %vm164, %v157, %v163
    %v167 = vadd.f32 %v143, %v165
    %168 = vst [vmem:[#allocation2] sm:$0xf] %v167
    %v169 = vld [vmem:[#allocation3] sm:$0xf]
    %v174 = vrot.slane %v79, 6
    %v175 = vrot.slane %v93, 6
    %v176 = vsel %vm150, %v72, %v174
    %v177 = vsel %vm150, %v86, %v175
    %v178 = vsel %vm153, %v176, %v176
    %v179 = vsel %vm155, %v176, %v178
    %v180 = vrot.slane %v177, 7
    %v181 = vsel %vm158, %v180, %v179
    %v182 = vsel %vm160, %v180, %v181
    %v183 = vsel %vm162, %v180, %v182
    %v184 = vsel %vm164, %v180, %v183
    %v186 = vmax.f32 %v169, %v184
    %187 = vst [vmem:[#allocation3] sm:$0xf] %v186
  $region17: #{spatial_attention1.1} parent=0 // pred_fallthru
    _
  // Predicated region
  $region18: #{spatial_attention1.1} parent=0 // pred_check
    %p188 = pneg %p94
  $region19: #{spatial_attention1.1} parent=0 // pred_check_branch
    %190 = sbr.rel (%p188) target = $region21
  $region20: #{spatial_attention1.1} parent=0 // pred_region
    %v191 = vld [vmem:[%s0] sm:$0xff]
    %v192 = vld [vmem:[%s0 + $0x8] sm:$0xff]
    %v193 = vld [vmem:[%s0 + $0x10] sm:$0xff]
    %v194 = vld [vmem:[%s0 + $0x18] sm:$0xff]
    %v195 = vld [vmem:[%s0 + $0x20] sm:$0x3]
    %v196 = vld [vmem:[%s0 + $0x28] sm:$0x3]
    %v197 = vld [vmem:[#allocation2] sm:$0xf]
    %199 = vst [vmem:[#allocation1] ss:$4 sm:$0xff] %v197
    %v200 = vld.sshfl [vmem:[#allocation1] sm:$0xff pattern:$0x73625140]
    %v201 = vld.sshfl [vmem:[#allocation1 + $0x8] sm:$0xff pattern:$0x73625140]
    %204 = vrot.lane.b32.xlu0 %v200, 17
    %v205 = vpop.permute.xlu0 %204
    %206 = vrot.lane.b32.xlu0 %v201, 17
    %v207 = vpop.permute.xlu0 %206
    %v208 = vlaneseq
    %v209 = vand.u32 %v208, 127
    %vm210 = vcmp.lt.s32.totalorder %v209, 17
    %v211 = vsel %vm210, %v205, %v207
    %v212 = vsel %vm210, %v207, %v205
    %v213 = vperm.slane %v191, 0
    %v214 = vperm.slane %v192, 0
    %v215 = vmul.f32 %v213, %v212
    %v216 = vmul.f32 %v214, %v211
    %v217 = vadd.f32 %v215, 0.0
    %v218 = vadd.f32 %v216, 0.0
    %219 = vst [vmem:[#allocation1] ss:$4 sm:$0xff] %v197
    %v220 = vld.sshfl [vmem:[#allocation1] sm:$0xff pattern:$0x73625140]
    %v221 = vld.sshfl [vmem:[#allocation1 + $0x8] sm:$0xff pattern:$0x73625140]
    %224 = vrot.lane.b32.xlu0 %v220, 16
    %v225 = vpop.permute.xlu0 %224
    %226 = vrot.lane.b32.xlu0 %v221, 16
    %v227 = vpop.permute.xlu0 %226
    %vm228 = vcmp.lt.s32.totalorder %v209, 16
    %v229 = vsel %vm228, %v225, %v227
    %v230 = vsel %vm228, %v227, %v225
    %v231 = vperm.slane %v191, 1
    %v232 = vperm.slane %v192, 1
    %v233 = vmul.f32 %v231, %v230
    %v234 = vmul.f32 %v232, %v229
    %v235 = vadd.f32 %v217, %v233
    %v236 = vadd.f32 %v218, %v234
    %237 = vst [vmem:[#allocation1] ss:$4 sm:$0xff] %v197
    %v238 = vld.sshfl [vmem:[#allocation1] sm:$0xff pattern:$0x73625140]
    %v239 = vld.sshfl [vmem:[#allocation1 + $0x8] sm:$0xff pattern:$0x73625140]
    %242 = vrot.lane.b32.xlu0 %v238, 15
    %v243 = vpop.permute.xlu0 %242
    %244 = vrot.lane.b32.xlu0 %v239, 15
    %v245 = vpop.permute.xlu0 %244
    %vm246 = vcmp.lt.s32.totalorder %v209, 15
    %v247 = vsel %vm246, %v243, %v245
    %v248 = vsel %vm246, %v245, %v243
    %v249 = vperm.slane %v191, 2
    %v250 = vperm.slane %v192, 2
    %v251 = vmul.f32 %v249, %v248
    %v252 = vmul.f32 %v250, %v247
    %v253 = vadd.f32 %v235, %v251
    %v254 = vadd.f32 %v236, %v252
    %255 = vst [vmem:[#allocation1] ss:$4 sm:$0xff] %v197
    %v256 = vld.sshfl [vmem:[#allocation1] sm:$0xff pattern:$0x73625140]
    %v257 = vld.sshfl [vmem:[#allocation1 + $0x8] sm:$0xff pattern:$0x73625140]
    %260 = vrot.lane.b32.xlu0 %v256, 1
    %v261 = vpop.permute.xlu0 %260
    %262 = vrot.lane.b32.xlu0 %v257, 1
    %v263 = vpop.permute.xlu0 %262
    %vm264 = vcmp.lt.s32.totalorder %v209, 1
    %v265 = vsel %vm264, %v261, %v263
    %v266 = vsel %vm264, %v263, %v261
    %v267 = vperm.slane %v191, 3
    %v268 = vperm.slane %v192, 3
    %v269 = vmul.f32 %v267, %v266
    %v270 = vmul.f32 %v268, %v265
    %v271 = vadd.f32 %v253, %v269
    %v272 = vadd.f32 %v254, %v270
    %v273 = vperm.slane %v191, 4
    %v274 = vperm.slane %v192, 4
    %275 = vst [vmem:[#allocation1] ss:$4 sm:$0xff] %v197
    %v276 = vld.sshfl [vmem:[#allocation1] sm:$0xff pattern:$0x73625140]
    %v277 = vld.sshfl [vmem:[#allocation1 + $0x8] sm:$0xff pattern:$0x73625140]
    %v280 = vmul.f32 %v273, %v276
    %v281 = vmul.f32 %v274, %v277
    %v282 = vadd.f32 %v271, %v280
    %v283 = vadd.f32 %v272, %v281
    %284 = vst [vmem:[#allocation1] ss:$4 sm:$0xff] %v197
    %v285 = vld.sshfl [vmem:[#allocation1] sm:$0xff pattern:$0x73625140]
    %v286 = vld.sshfl [vmem:[#allocation1 + $0x8] sm:$0xff pattern:$0x73625140]
    %289 = vrot.lane.b32.xlu0 %v285, 127
    %v290 = vpop.permute.xlu0 %289
    %291 = vrot.lane.b32.xlu0 %v286, 127
    %v292 = vpop.permute.xlu0 %291
    %vm293 = vcmp.lt.s32.totalorder %v209, 127
    %v294 = vsel %vm293, %v290, %v292
    %v295 = vsel %vm293, %v292, %v290
    %v296 = vperm.slane %v191, 5
    %v297 = vperm.slane %v192, 5
    %v298 = vmul.f32 %v296, %v294
    %v299 = vmul.f32 %v297, %v295
    %v300 = vadd.f32 %v282, %v298
    %v301 = vadd.f32 %v283, %v299
    %302 = vst [vmem:[#allocation1] ss:$4 sm:$0xff] %v197
    %v303 = vld.sshfl [vmem:[#allocation1] sm:$0xff pattern:$0x73625140]
    %v304 = vld.sshfl [vmem:[#allocation1 + $0x8] sm:$0xff pattern:$0x73625140]
    %307 = vrot.lane.b32.xlu0 %v303, 113
    %v308 = vpop.permute.xlu0 %307
    %309 = vrot.lane.b32.xlu0 %v304, 113
    %v310 = vpop.permute.xlu0 %309
    %vm311 = vcmp.lt.s32.totalorder %v209, 113
    %v312 = vsel %vm311, %v308, %v310
    %v313 = vsel %vm311, %v310, %v308
    %v314 = vperm.slane %v191, 6
    %v315 = vperm.slane %v192, 6
    %v316 = vmul.f32 %v314, %v312
    %v317 = vmul.f32 %v315, %v313
    %v318 = vadd.f32 %v300, %v316
    %v319 = vadd.f32 %v301, %v317
    %320 = vst [vmem:[#allocation1] ss:$4 sm:$0xff] %v197
    %v321 = vld.sshfl [vmem:[#allocation1] sm:$0xff pattern:$0x73625140]
    %v322 = vld.sshfl [vmem:[#allocation1 + $0x8] sm:$0xff pattern:$0x73625140]
    %325 = vrot.lane.b32.xlu0 %v321, 112
    %v326 = vpop.permute.xlu0 %325
    %327 = vrot.lane.b32.xlu0 %v322, 112
    %v328 = vpop.permute.xlu0 %327
    %vm329 = vcmp.lt.s32.totalorder %v209, 112
    %v330 = vsel %vm329, %v326, %v328
    %v331 = vsel %vm329, %v328, %v326
    %v332 = vperm.slane %v191, 7
    %v333 = vperm.slane %v192, 7
    %v334 = vmul.f32 %v332, %v330
    %v335 = vmul.f32 %v333, %v331
    %v336 = vadd.f32 %v318, %v334
    %v337 = vadd.f32 %v319, %v335
    %338 = vst [vmem:[#allocation1] ss:$4 sm:$0xff] %v197
    %v339 = vld.sshfl [vmem:[#allocation1] sm:$0xff pattern:$0x73625140]
    %v340 = vld.sshfl [vmem:[#allocation1 + $0x8] sm:$0xff pattern:$0x73625140]
    %343 = vrot.lane.b32.xlu0 %v339, 111
    %v344 = vpop.permute.xlu0 %343
    %345 = vrot.lane.b32.xlu0 %v340, 111
    %v346 = vpop.permute.xlu0 %345
    %vm347 = vcmp.lt.s32.totalorder %v209, 111
    %v348 = vsel %vm347, %v344, %v346
    %v349 = vsel %vm347, %v346, %v344
    %v350 = vperm.slane %v193, 0
    %v351 = vperm.slane %v194, 0
    %v352 = vmul.f32 %v350, %v348
    %v353 = vmul.f32 %v351, %v349
    %v354 = vadd.f32 %v336, %v352
    %v355 = vadd.f32 %v337, %v353
    %v356 = vld [vmem:[#allocation3] sm:$0xf]
    %358 = vst [vmem:[#allocation1] ss:$4 sm:$0xff] %v356
    %v359 = vld.sshfl [vmem:[#allocation1] sm:$0xff pattern:$0x73625140]
    %v360 = vld.sshfl [vmem:[#allocation1 + $0x8] sm:$0xff pattern:$0x73625140]
    %363 = vrot.lane.b32.xlu0 %v359, 17
    %v364 = vpop.permute.xlu0 %363
    %365 = vrot.lane.b32.xlu0 %v360, 17
    %v366 = vpop.permute.xlu0 %365
    %v367 = vsel %vm210, %v364, %v366
    %v368 = vsel %vm210, %v366, %v364
    %v369 = vperm.slane %v193, 1
    %v370 = vperm.slane %v194, 1
    %v371 = vmul.f32 %v369, %v368
    %v372 = vmul.f32 %v370, %v367
    %v373 = vadd.f32 %v354, %v371
    %v374 = vadd.f32 %v355, %v372
    %375 = vst [vmem:[#allocation1] ss:$4 sm:$0xff] %v356
    %v376 = vld.sshfl [vmem:[#allocation1] sm:$0xff pattern:$0x73625140]
    %v377 = vld.sshfl [vmem:[#allocation1 + $0x8] sm:$0xff pattern:$0x73625140]
    %380 = vrot.lane.b32.xlu0 %v376, 16
    %v381 = vpop.permute.xlu0 %380
    %382 = vrot.lane.b32.xlu0 %v377, 16
    %v383 = vpop.permute.xlu0 %382
    %v384 = vsel %vm228, %v381, %v383
    %v385 = vsel %vm228, %v383, %v381
    %v386 = vperm.slane %v193, 2
    %v387 = vperm.slane %v194, 2
    %v388 = vmul.f32 %v386, %v385
    %v389 = vmul.f32 %v387, %v384
    %v390 = vadd.f32 %v373, %v388
    %v391 = vadd.f32 %v374, %v389
    %392 = vst [vmem:[#allocation1] ss:$4 sm:$0xff] %v356
    %v393 = vld.sshfl [vmem:[#allocation1] sm:$0xff pattern:$0x73625140]
    %v394 = vld.sshfl [vmem:[#allocation1 + $0x8] sm:$0xff pattern:$0x73625140]
    %397 = vrot.lane.b32.xlu0 %v393, 15
    %v398 = vpop.permute.xlu0 %397
    %399 = vrot.lane.b32.xlu0 %v394, 15
    %v400 = vpop.permute.xlu0 %399
    %v401 = vsel %vm246, %v398, %v400
    %v402 = vsel %vm246, %v400, %v398
    %v403 = vperm.slane %v193, 3
    %v404 = vperm.slane %v194, 3
    %v405 = vmul.f32 %v403, %v402
    %v406 = vmul.f32 %v404, %v401
    %v407 = vadd.f32 %v390, %v405
    %v408 = vadd.f32 %v391, %v406
    %409 = vst [vmem:[#allocation1] ss:$4 sm:$0xff] %v356
    %v410 = vld.sshfl [vmem:[#allocation1] sm:$0xff pattern:$0x73625140]
    %v411 = vld.sshfl [vmem:[#allocation1 + $0x8] sm:$0xff pattern:$0x73625140]
    %414 = vrot.lane.b32.xlu0 %v410, 1
    %v415 = vpop.permute.xlu0 %414
    %416 = vrot.lane.b32.xlu0 %v411, 1
    %v417 = vpop.permute.xlu0 %416
    %v418 = vsel %vm264, %v415, %v417
    %v419 = vsel %vm264, %v417, %v415
    %v420 = vperm.slane %v193, 4
    %v421 = vperm.slane %v194, 4
    %v422 = vmul.f32 %v420, %v419
    %v423 = vmul.f32 %v421, %v418
    %v424 = vadd.f32 %v407, %v422
    %v425 = vadd.f32 %v408, %v423
    %v426 = vperm.slane %v193, 5
    %v427 = vperm.slane %v194, 5
    %428 = vst [vmem:[#allocation1] ss:$4 sm:$0xff] %v356
    %v429 = vld.sshfl [vmem:[#allocation1] sm:$0xff pattern:$0x73625140]
    %v430 = vld.sshfl [vmem:[#allocation1 + $0x8] sm:$0xff pattern:$0x73625140]
    %v433 = vmul.f32 %v426, %v429
    %v434 = vmul.f32 %v427, %v430
    %v435 = vadd.f32 %v424, %v433
    %v436 = vadd.f32 %v425, %v434
    %437 = vst [vmem:[#allocation1] ss:$4 sm:$0xff] %v356
    %v438 = vld.sshfl [vmem:[#allocation1] sm:$0xff pattern:$0x73625140]
    %v439 = vld.sshfl [vmem:[#allocation1 + $0x8] sm:$0xff pattern:$0x73625140]
    %442 = vrot.lane.b32.xlu0 %v438, 127
    %v443 = vpop.permute.xlu0 %442
    %444 = vrot.lane.b32.xlu0 %v439, 127
    %v445 = vpop.permute.xlu0 %444
    %v446 = vsel %vm293, %v443, %v445
    %v447 = vsel %vm293, %v445, %v443
    %v448 = vperm.slane %v193, 6
    %v449 = vperm.slane %v194, 6
    %v450 = vmul.f32 %v448, %v446
    %v451 = vmul.f32 %v449, %v447
    %v452 = vadd.f32 %v435, %v450
    %v453 = vadd.f32 %v436, %v451
    %454 = vst [vmem:[#allocation1] ss:$4 sm:$0xff] %v356
    %v455 = vld.sshfl [vmem:[#allocation1] sm:$0xff pattern:$0x73625140]
    %v456 = vld.sshfl [vmem:[#allocation1 + $0x8] sm:$0xff pattern:$0x73625140]
    %459 = vrot.lane.b32.xlu0 %v455, 113
    %v460 = vpop.permute.xlu0 %459
    %461 = vrot.lane.b32.xlu0 %v456, 113
    %v462 = vpop.permute.xlu0 %461
    %v463 = vsel %vm311, %v460, %v462
    %v464 = vsel %vm311, %v462, %v460
    %v465 = vperm.slane %v193, 7
    %v466 = vperm.slane %v194, 7
    %v467 = vmul.f32 %v465, %v463
    %v468 = vmul.f32 %v466, %v464
    %v469 = vadd.f32 %v452, %v467
    %v470 = vadd.f32 %v453, %v468
    %471 = vst [vmem:[#allocation1] ss:$4 sm:$0xff] %v356
    %v472 = vld.sshfl [vmem:[#allocation1] sm:$0xff pattern:$0x73625140]
    %v473 = vld.sshfl [vmem:[#allocation1 + $0x8] sm:$0xff pattern:$0x73625140]
    %476 = vrot.lane.b32.xlu0 %v472, 112
    %v477 = vpop.permute.xlu0 %476
    %478 = vrot.lane.b32.xlu0 %v473, 112
    %v479 = vpop.permute.xlu0 %478
    %v480 = vsel %vm329, %v477, %v479
    %v481 = vsel %vm329, %v479, %v477
    %v482 = vperm.slane %v195, 0
    %v483 = vperm.slane %v196, 0
    %v484 = vmul.f32 %v482, %v480
    %v485 = vmul.f32 %v483, %v481
    %v486 = vadd.f32 %v469, %v484
    %v487 = vadd.f32 %v470, %v485
    %488 = vst [vmem:[#allocation1] ss:$4 sm:$0xff] %v356
    %v489 = vld.sshfl [vmem:[#allocation1] sm:$0xff pattern:$0x73625140]
    %v490 = vld.sshfl [vmem:[#allocation1 + $0x8] sm:$0xff pattern:$0x73625140]
    %493 = vrot.lane.b32.xlu0 %v489, 111
    %v494 = vpop.permute.xlu0 %493
    %495 = vrot.lane.b32.xlu0 %v490, 111
    %v496 = vpop.permute.xlu0 %495
    %v497 = vsel %vm347, %v494, %v496
    %v498 = vsel %vm347, %v496, %v494
    %v499 = vperm.slane %v195, 1
    %v500 = vperm.slane %v196, 1
    %v501 = vmul.f32 %v499, %v497
    %v502 = vmul.f32 %v500, %v498
    %v503 = vadd.f32 %v486, %v501
    %v504 = vadd.f32 %v487, %v502
    %v505 = vxor.u32 %v503, 2147483648
    %v506 = vxor.u32 %v504, 2147483648
    %v507 = vmul.f32 %v505, 1.442695
    %v508 = vpow.pop %v507
    %v509 = vmul.f32 %v506, 1.442695
    %v510 = vpow.pop %v509
    %v511 = vadd.f32 %v508, 1.0
    %v512 = vadd.f32 %v510, 1.0
    %v513 = vrcp.pop %v511
    %v514 = vmul.f32 %v511, %v513
    %v515 = vsub.f32 1.0, %v514
    %v516 = vmul.f32 %v513, %v515
    %v517 = vadd.f32 %v513, %v516
    %vm518 = vweird.f32 %v511
    %vm519 = vweird.f32 %v513
    %vm520 = vmor %vm518, %vm519
    %v521 = vsel %vm520, %v513, %v517
    %v522 = vand.u32 2147483647, %v511
    %vm523 = vcmp.eq.f32.partialorder %v522, 8.507059e+37
    %v524 = vand.u32 %v511, 2147483648
    %v525 = vor.u32 1.1754944e-38, %v524
    %v526 = vsel %vm523, %v525, %v521
    %v527 = vmul.f32 1.0, %v526
    %v528 = vrcp.pop %v512
    %v529 = vmul.f32 %v512, %v528
    %v530 = vsub.f32 1.0, %v529
    %v531 = vmul.f32 %v528, %v530
    %v532 = vadd.f32 %v528, %v531
    %vm533 = vweird.f32 %v512
    %vm534 = vweird.f32 %v528
    %vm535 = vmor %vm533, %vm534
    %v536 = vsel %vm535, %v528, %v532
    %v537 = vand.u32 2147483647, %v512
    %vm538 = vcmp.eq.f32.partialorder %v537, 8.507059e+37
    %v539 = vand.u32 %v512, 2147483648
    %v540 = vor.u32 1.1754944e-38, %v539
    %v541 = vsel %vm538, %v540, %v536
    %v542 = vmul.f32 1.0, %v541
    %v545 = vrot.slane %v542, 6
    %vm546 = vcmask 1041408
    %v547 = vsel %vm546, %v527, %v545
    %549 = vst [vmem:[%s2] sm:$0xf] %v547
  $region21: #{spatial_attention1.1} parent=0 // pred_fallthru
    _
  // Predicated region
  $region22: #{spatial_attention1.1} parent=0 // pred_check
    _
  $region23: #{spatial_attention1.1} parent=0 // pred_check_branch
    %551 = sbr.rel (0) target = $region25
  $region24: #{spatial_attention1.1} parent=0 // pred_region
    _
  $region25: #{spatial_attention1.1} parent=0 // pred_fallthru
    _
  // Predicated region
  $region26: #{spatial_attention1.1} parent=0 // pred_check
    _
  $region27: #{spatial_attention1.1} parent=0 // pred_check_branch
    %553 = sbr.rel (0) target = $region29
  $region28: #{spatial_attention1.1} parent=0 // pred_region
    _
  $region29: #{spatial_attention1.1} parent=0 // pred_fallthru
    _

</llo_original>
